<compile_context>
chip_gen: v6e
topology: v6e:2x2x1
jax: 0.10.0
libtpu: 0.0.40
codegen_flags: <defaults>
</compile_context>

<pallas_src>
import math

import jax
import jax.numpy as jnp
from jax.experimental import pallas as pl
from jax.experimental.pallas import tpu as pltpu

BN_EPS = 1e-5


def _round_up(x, m):
    return (x + m - 1) // m * m


# ----------------------------------------------------------------------------
# Fused matmul + (BN-folded) shift + activation Pallas kernel
# ----------------------------------------------------------------------------
def _make_kernel(act, nk):
    def _act(y):
        if act == "relu":
            return jnp.maximum(y, 0.0)
        return jnp.where(y > 0, y, 0.2 * y)          # LeakyReLU(0.2)

    if nk == 1:
        def kernel(p_ref, w_ref, b_ref, o_ref):
            y = jnp.dot(p_ref[...], w_ref[...],
                        preferred_element_type=jnp.float32)
            o_ref[...] = _act(y + b_ref[...])
    else:
        def kernel(p_ref, w_ref, b_ref, o_ref):
            k = pl.program_id(2)

            @pl.when(k == 0)
            def _init():
                o_ref[...] = jnp.zeros_like(o_ref)

            o_ref[...] += jnp.dot(p_ref[...], w_ref[...],
                                  preferred_element_type=jnp.float32)

            @pl.when(k == nk - 1)
            def _finalize():
                o_ref[...] = _act(o_ref[...] + b_ref[...])

    return kernel


def _fused_matmul_shift_act(patches, weights, shift, act):
    """act(patches @ weights + shift), fp32 accumulation on the MXU.

    patches: (M, K) bf16   weights: (K, N) bf16 (BN scale pre-folded)
    shift:   (N,)  fp32    returns  (M, N) fp32
    """
    M, K = patches.shape
    N = weights.shape[1]

    # --- tile selection -----------------------------------------------------
    tn = 256 if N >= 256 else 128
    Npad = _round_up(N, tn)

    Kpad = _round_up(K, 128)
    if Kpad <= 2048:
        tk = Kpad                                   # single K step when possible
    else:
        tk = 128
        for cand in range(2048, 127, -128):
            if Kpad % cand == 0:
                tk = cand
                break
    nk = Kpad // tk

    tm = min(512, _round_up(M, 8))
    Mpad = _round_up(M, tm)
    # Keep >= 2 parallel grid steps when possible (v7x has 2 TensorCores).
    if Mpad // tm == 1 and Npad // tn == 1 and Mpad >= 16 and Mpad % 16 == 0:
        tm = Mpad // 2

    # --- operand padding (already bf16 -> cheap) ------------------------------
    p = patches
    if (Mpad, Kpad) != (M, K):
        p = jnp.pad(p, ((0, Mpad - M), (0, Kpad - K)))
    w = weights
    if (Kpad, Npad) != (K, N):
        w = jnp.pad(w, ((0, Kpad - K), (0, Npad - N)))
    b = jnp.pad(shift.astype(jnp.float32).reshape(1, N),
                ((0, 0), (0, Npad - N)))

    grid = (Mpad // tm, Npad // tn, nk)

    out = pl.pallas_call(
        _make_kernel(act, nk),
        out_shape=jax.ShapeDtypeStruct((Mpad, Npad), jnp.float32),
        grid_spec=pltpu.PrefetchScalarGridSpec(
            num_scalar_prefetch=0,
            grid=grid,
            in_specs=[
                pl.BlockSpec((tm, tk), lambda i, j, k: (i, k)),
                pl.BlockSpec((tk, tn), lambda i, j, k: (k, j)),
                pl.BlockSpec((1, tn), lambda i, j, k: (0, j)),
            ],
            out_specs=pl.BlockSpec((tm, tn), lambda i, j, k: (i, j)),
        ),
        compiler_params=pltpu.CompilerParams(
            dimension_semantics=("parallel", "parallel", "arbitrary")),
    )(p, w, b)

    if (Mpad, Npad) != (M, N):
        out = out[:M, :N]
    return out


# ----------------------------------------------------------------------------
# im2col glue (bf16, strided slices / reshapes only)
# ----------------------------------------------------------------------------
def _im2col_down(x):
    """x: (N, D, H, W, Ci) bf16 -> patches (N*Do*Ho*Wo, 64*Ci) for k=4,s=2,p=1."""
    N, D, H, W, Ci = x.shape
    Do, Ho, Wo = D // 2, H // 2, W // 2
    xp = jnp.pad(x, ((0, 0), (1, 1), (1, 1), (1, 1), (0, 0)))
    cols = []
    for kd in range(4):
        for kh in range(4):
            for kw in range(4):
                cols.append(xp[:, kd:kd + 2 * Do:2,
                               kh:kh + 2 * Ho:2,
                               kw:kw + 2 * Wo:2, :])
    p = jnp.stack(cols, axis=-2)                       # (N,Do,Ho,Wo,64,Ci)
    return p.reshape(N * Do * Ho * Wo, 64 * Ci), (N, Do, Ho, Wo)


def _im2col_up(x):
    """x: (N, D, H, W, Ci) bf16 -> shared 27-tap patches (N*D*H*W, 27*Ci) for
    ConvTranspose3d(k=4, s=2, p=1): 3 distinct offsets per spatial dim."""
    N, D, H, W, Ci = x.shape
    xp = jnp.pad(x, ((0, 0), (1, 1), (1, 1), (1, 1), (0, 0)))
    cols = []
    for a in range(3):
        for b in range(3):
            for c in range(3):
                cols.append(xp[:, a:a + D, b:b + H, c:c + W, :])
    p = jnp.stack(cols, axis=-2)                       # (N,D,H,W,27,Ci)
    return p.reshape(N * D * H * W, 27 * Ci), (N, D, H, W)


def _up_shared_weights(w):
    """w: (Ci, Co, 4, 4, 4) ConvTranspose3d layout -> (27*Ci, 8*Co).

    Rows ordered by tap offset (a,b,c) in {0,1,2}^3 (Ci innermost); columns by
    output phase (pz,py,pw) in {0,1}^3 (Co innermost).  Per dim, phase p uses
    tap offset j iff j - p in {0,1}, with weight index 3 - 2j + p; all other
    (phase, tap) pairs are zero blocks."""
    Ci, Co = w.shape[0], w.shape[1]
    wt = jnp.transpose(w, (2, 3, 4, 0, 1))             # (kd, kh, kw, Ci, Co)
    zero = jnp.zeros((Ci, Co), w.dtype)
    rows = []
    for a in range(3):
        for b in range(3):
            for c in range(3):
                blocks = []
                for pz in range(2):
                    for py in range(2):
                        for pw in range(2):
                            if (0 <= a - pz <= 1 and 0 <= b - py <= 1
                                    and 0 <= c - pw <= 1):
                                blocks.append(wt[3 - 2 * a + pz,
                                                 3 - 2 * b + py,
                                                 3 - 2 * c + pw])
                            else:
                                blocks.append(zero)
                rows.append(jnp.concatenate(blocks, axis=1))   # (Ci, 8*Co)
    return jnp.concatenate(rows, axis=0)                        # (27*Ci, 8*Co)


# ----------------------------------------------------------------------------
# Block forward (matches the PyTorch module in eval mode)
# ----------------------------------------------------------------------------
def init_block_params(key, in_ch, out_ch, *, down):
    kw, kg, kb, km, kv = jax.random.split(key, 5)
    shape = (out_ch, in_ch, 4, 4, 4) if down else (in_ch, out_ch, 4, 4, 4)
    fan_in = in_ch * 64
    return {
        "weight": jax.random.normal(kw, shape, jnp.float32) / math.sqrt(fan_in),
        "bn_gamma": 1.0 + 0.2 * jax.random.uniform(kg, (out_ch,), jnp.float32, -1.0, 1.0),
        "bn_beta": 0.1 * jax.random.normal(kb, (out_ch,), jnp.float32),
        "bn_mean": 0.1 * jax.random.normal(km, (out_ch,), jnp.float32),
        "bn_var": 1.0 + 0.2 * jax.random.uniform(kv, (out_ch,), jnp.float32, -1.0, 1.0),
    }


def block_forward(params, x_ncdhw, *, down=True, act="relu", use_dropout=False):
    x = jnp.transpose(x_ncdhw, (0, 2, 3, 4, 1)).astype(jnp.bfloat16)  # NCDHW->NDHWC, bf16
    w = params["weight"]

    scale = params["bn_gamma"] / jnp.sqrt(params["bn_var"] + BN_EPS)   # fp32
    shift = params["bn_beta"] - params["bn_mean"] * scale              # fp32

    if down:
        Co, Ci = w.shape[0], w.shape[1]
        wt = jnp.transpose(w, (2, 3, 4, 1, 0)).reshape(64 * Ci, Co)
        wt = (wt * scale[None, :]).astype(jnp.bfloat16)     # fold BN scale in fp32, then cast
        patches, (N, Do, Ho, Wo) = _im2col_down(x)
        out = _fused_matmul_shift_act(patches, wt, shift, act)
        y = out.reshape(N, Do, Ho, Wo, Co)
    else:
        Ci, Co = w.shape[0], w.shape[1]
        wt = _up_shared_weights(w)                           # (27*Ci, 8*Co) fp32
        wt = (wt * jnp.tile(scale, 8)[None, :]).astype(jnp.bfloat16)
        patches, (N, D, H, W) = _im2col_up(x)
        out = _fused_matmul_shift_act(patches, wt, jnp.tile(shift, 8), act)
        y = out.reshape(N, D, H, W, 2, 2, 2, Co)
        y = jnp.transpose(y, (0, 1, 4, 2, 5, 3, 6, 7))       # interleave the 8 phases
        y = y.reshape(N, 2 * D, 2 * H, 2 * W, Co)

    # Dropout(0.5) is identity in eval mode.
    # TODO(synk): train-mode dropout randomness / batch-stat BN not reproduced.
    del use_dropout
    return jnp.transpose(y, (0, 4, 1, 2, 3))                 # NDHWC -> NCDHW


# ----------------------------------------------------------------------------
# Pure-JAX reference (lax convs) for validation
# ----------------------------------------------------------------------------
def _reference_block(params, x_ncdhw, *, down, act):
    x = jnp.transpose(x_ncdhw, (0, 2, 3, 4, 1))
    w = params["weight"]
    scale = params["bn_gamma"] / jnp.sqrt(params["bn_var"] + BN_EPS)
    shift = params["bn_beta"] - params["bn_mean"] * scale
    dn = ("NDHWC", "DHWIO", "NDHWC")
    if down:
        wt = jnp.transpose(w, (2, 3, 4, 1, 0))
        y = jax.lax.conv_general_dilated(x, wt, (2, 2, 2), [(1, 1)] * 3,
                                         dimension_numbers=dn)
    else:
        wt = jnp.transpose(w, (2, 3, 4, 0, 1))
        y = jax.lax.conv_general_dilated(x, wt[::-1, ::-1, ::-1], (1, 1, 1),
                                         [(2, 2)] * 3, lhs_dilation=(2, 2, 2),
                                         dimension_numbers=dn)
    y = y * scale + shift
    y = jnp.maximum(y, 0.0) if act == "relu" else jnp.where(y > 0, y, 0.2 * y)
    return jnp.transpose(y, (0, 4, 1, 2, 3))


# ----------------------------------------------------------------------------
# main
# ----------------------------------------------------------------------------
if __name__ == "__main__":
    key = jax.random.PRNGKey(0)
    k1, k2, k3, k4 = jax.random.split(key, 4)

    # --- down Block: Conv3d(4 -> 32, k=4, s=2, p=1) + BN + LeakyReLU(0.2) ---
    N, Ci, D, H, W = 2, 4, 16, 16, 16
    Co = 32
    x = jax.random.normal(k1, (N, Ci, D, H, W), jnp.float32)
    p_down = init_block_params(k2, Ci, Co, down=True)

    fwd_down = jax.jit(lambda p, xx: block_forward(p, xx, down=True, act="leaky"))
    y_down = fwd_down(p_down, x)
    jax.block_until_ready(y_down)
    assert y_down.shape == (N, Co, D // 2, H // 2, W // 2)
    assert y_down.dtype == jnp.float32

    ref_down = _reference_block(p_down, x, down=True, act="leaky")
    tol = 3e-2 * (1.0 + float(jnp.max(jnp.abs(ref_down))))
    assert float(jnp.max(jnp.abs(y_down - ref_down))) < tol

    # --- up Block: ConvTranspose3d(32 -> 16, k=4, s=2, p=1) + BN + ReLU ------
    Ci_u, Co_u, Du = 32, 16, 8
    xu = jax.random.normal(k3, (N, Ci_u, Du, Du, Du), jnp.float32)
    p_up = init_block_params(k4, Ci_u, Co_u, down=False)

    fwd_up = jax.jit(lambda p, xx: block_forward(p, xx, down=False, act="relu",
                                                 use_dropout=True))
    y_up = fwd_up(p_up, xu)
    jax.block_until_ready(y_up)
    assert y_up.shape == (N, Co_u, 2 * Du, 2 * Du, 2 * Du)
    assert y_up.dtype == jnp.float32

    ref_up = _reference_block(p_up, xu, down=False, act="relu")
    tol_u = 3e-2 * (1.0 + float(jnp.max(jnp.abs(ref_up))))
    assert float(jnp.max(jnp.abs(y_up - ref_up))) < tol_u

    print("KERNEL_OK")
</pallas_src>

<mosaic_0001>
module attributes {stable_mosaic.version = 11 : i64} {
  func.func @kernel(%arg0: i32, %arg1: i32, %arg2: i32, %arg3: memref<512x256xbf16, #tpu.memory_space<vmem>>, %arg4: memref<256x128xbf16, #tpu.memory_space<vmem>>, %arg5: memref<1x128xf32, #tpu.memory_space<vmem>>, %arg6: memref<512x128xf32, #tpu.memory_space<vmem>>) attributes {dimension_semantics = [#tpu.dimension_semantics<parallel>, #tpu.dimension_semantics<parallel>, #tpu.dimension_semantics<arbitrary>], iteration_bounds = array<i64: 2, 1, 1>, scalar_prefetch = 0 : i64, scratch_operands = 0 : i64, tpu.core_type = #tpu.core_type<tc>, window_params = [{transform_indices = @transform_0, window_bounds = array<i64: 512, 256>}, {transform_indices = @transform_1, window_bounds = array<i64: 256, 128>}, {transform_indices = @transform_2, window_bounds = array<i64: 1, 128>}, {transform_indices = @transform_3, window_bounds = array<i64: 512, 128>}]} {
    %c0 = arith.constant 0 : index
    %c0_0 = arith.constant 0 : index
    %0 = vector.load %arg3[%c0, %c0_0] : memref<512x256xbf16, #tpu.memory_space<vmem>>, vector<512x256xbf16>
    %c0_1 = arith.constant 0 : index
    %c0_2 = arith.constant 0 : index
    %1 = vector.load %arg4[%c0_1, %c0_2] : memref<256x128xbf16, #tpu.memory_space<vmem>>, vector<256x128xbf16>
    %cst = arith.constant dense<0.000000e+00> : vector<512x128xf32>
    %2 = tpu.matmul %0, %1, %cst {dimension_numbers = #tpu.dot_dimension_numbers<[1], [0], [0], [1], [0, 0, 1, 1], [], []>} : vector<512x256xbf16>, vector<256x128xbf16>, vector<512x128xf32> -> vector<512x128xf32>
    %c0_3 = arith.constant 0 : index
    %c0_4 = arith.constant 0 : index
    %3 = vector.load %arg5[%c0_3, %c0_4] : memref<1x128xf32, #tpu.memory_space<vmem>>, vector<1x128xf32>
    %4 = vector.broadcast %3 : vector<1x128xf32> to vector<512x128xf32>
    %5 = arith.addf %2, %4 : vector<512x128xf32>
    %cst_5 = arith.constant 0.000000e+00 : f32
    %6 = vector.broadcast %cst_5 : f32 to vector<512x128xf32>
    %7 = arith.cmpf ogt, %5, %6 : vector<512x128xf32>
    %cst_6 = arith.constant 2.000000e-01 : f32
    %8 = vector.broadcast %cst_6 : f32 to vector<512x128xf32>
    %9 = arith.mulf %8, %5 : vector<512x128xf32>
    %10 = arith.select %7, %5, %9 : vector<512x128xi1>, vector<512x128xf32>
    %c0_7 = arith.constant 0 : index
    %c0_8 = arith.constant 0 : index
    %11 = vector.load %arg6[%c0_7, %c0_8] : memref<512x128xf32, #tpu.memory_space<vmem>>, vector<512x128xf32>
    tpu.vector_store %arg6[%c0_7, %c0_8], %10 {strides = array<i32>} : memref<512x128xf32, #tpu.memory_space<vmem>>, vector<512x128xf32>,
    return
  }
  func.func @transform_0(%arg0: i32, %arg1: i32, %arg2: i32) -> (i32, i32) {
    %c0_i32 = arith.constant 0 : i32
    return %arg0, %arg2 : i32, i32
  }
  func.func @transform_1(%arg0: i32, %arg1: i32, %arg2: i32) -> (i32, i32) {
    %c0_i32 = arith.constant 0 : i32
    return %arg2, %arg1 : i32, i32
  }
  func.func @transform_2(%arg0: i32, %arg1: i32, %arg2: i32) -> (i32, i32) {
    %c0_i32 = arith.constant 0 : i32
    %c0_i32_0 = arith.constant 0 : i32
    return %c0_i32, %arg1 : i32, i32
  }
  func.func @transform_3(%arg0: i32, %arg1: i32, %arg2: i32) -> (i32, i32) {
    %c0_i32 = arith.constant 0 : i32
    return %arg0, %arg1 : i32, i32
  }
}

</mosaic_0001>

<llo_original>
// kernel: _lambda_.1
$region0: #{_lambda_.1}
  #allocation0 [shape = 'u32[]', space=smem, size = 0x4, offset = 0x4, fixed_abs, tag = 'smem constant byte address 0x4 - core index']
  #allocation1 [shape = 'u32[144,128]{1,0:T(1,128)}', space=vmem, size = 0x12000, scoped, tag = 'internal scratch']
  %s0 = inlined_call_operand.vmem [shape: bf16[1024,256], index: 0, kind: input, shape index: {}]
  %s1 = inlined_call_operand.vmem [shape: bf16[256,128], index: 1, kind: input, shape index: {}]
  %s2 = inlined_call_operand.vmem [shape: f32[1,128], index: 2, kind: input, shape index: {}]
  %s3 = inlined_call_operand.hbm [shape: f32[1024,128], index: 3, kind: output, shape index: {}]
  %s4 = sld [smem:[#allocation0]]
  $region45: #{_lambda_.1} parent=0
    _
  %s6 = ssub.s32 1, %s4
  %s7 = scalar_select 0, %s6, %s4
  $region1: #{_lambda_.1} parent=0
    #allocation2 [shape = 'u8[524288]{0}', space=vmem, size = 0x80000, scoped, tag = 'output window, operand 0']
    #allocation3 [shape = 's32[2]{0}', space=sflag, size = 0x8, scoped, tag = 'scoped memory for _lambda_.1']
    %8 = vsyncpa [#allocation3], 0
    %s9 = scalar_lea.sflag [#allocation3], 1
    %10 = vsyncpa %s9, 0
    loop: start=0, step=1, limit=4
    $region2: #{_lambda_.1} parent=1 // loop_pre_header
      _
    $region3: #{_lambda_.1} parent=1 // loop_header
      %s12 = sphi 0, %s16
      %p13 = scmp.ge.s32.totalorder %s12, 4
      %s19 = sphi 0, %s38
      %s20 = sphi 0, %s34
      %s21 = sphi 0, %s30
      %s22 = sphi 0, %s19
      %s23 = sphi 0, %s20
      %s24 = sphi 0, %s21
      %s25 = sphi 0, %s22
      %s26 = sphi 0, %s23
      %s27 = sphi 0, %s24
      %s43 = sphi 0, %s45
      %s46 = sphi 0, %s43
      %s47 = sphi 0, %s46
      %s63 = sphi 0, %s47
      %s71 = sphi 0, %s73
      %s74 = sphi 0, %s71
      %s75 = sphi 0, %s74
      %s91 = sphi 0, %s75
      %s97 = sphi 0, %s99
      %s100 = sphi 0, %s97
      %s101 = sphi 0, %s100
      %s117 = sphi 0, %s101
      %s125 = sphi 0, %s127
      %s128 = sphi 0, %s125
      %s129 = sphi 0, %s128
      %s145 = sphi 0, %s129
    $region4: #{_lambda_.1} parent=1 // loop_header_branch
      %15 = sbr.rel (%p13) target = $region8
    $region5: #{_lambda_.1} parent=1 // loop_body
      %s17 = ssub.s32 %s12, 1
      %s18 = ssub.s32 %s12, 2
      %s28 = sadd.s32 1, %s21
      %p29 = scmp.ge.s32.totalorder %s28, 1
      %s30 = scalar_select %p29, 0, %s28
      %s31 = sadd.s32 1, %s20
      %s32 = scalar_select %p29, %s31, %s20
      %p33 = scmp.ge.s32.totalorder %s32, 1
      %s34 = scalar_select %p33, 0, %s32
      %s35 = sadd.s32 1, %s19
      %s36 = scalar_select %p33, %s35, %s19
      %p37 = scmp.ge.s32.totalorder %s36, 2
      %s38 = scalar_select %p37, 0, %s36
      %s39 = ssub.s32 %s19, %s38
      %s40 = ssub.s32 %s21, %s30
      %s41 = sor.u32 %s39, %s40
      %p42 = scmp.eq.s32.totalorder %s41, 0
      %s44 = sadd.s32 %s43, 1
      %s45 = scalar_select %p42, %s43, %s44
      %p48 = pneg %p42
      %p49 = scmp.eq.s32.totalorder %s12, 1
      %p50 = por %p48, %p49
      %p51 = scmp.ne.s32.totalorder %s43, %s46
      %p52 = scmp.eq.s32.totalorder %s12, 0
      %p53 = por %p51, %p52
      %p54 = scmp.ne.s32.totalorder %s43, %s46
      %p55 = scmp.eq.s32.totalorder %s17, 1
      %p56 = por %p54, %p55
      %p57 = scmp.ne.s32.totalorder %s46, %s47
      %p58 = scmp.eq.s32.totalorder %s17, 0
      %p59 = por %p57, %p58
      %p60 = scmp.ne.s32.totalorder %s46, %s47
      %p61 = scmp.eq.s32.totalorder %s18, 1
      %p62 = por %p60, %p61
      %p64 = scmp.ne.s32.totalorder %s47, %s63
      %p65 = scmp.eq.s32.totalorder %s18, 0
      %p66 = por %p64, %p65
      %s67 = ssub.s32 %s21, %s30
      %s68 = ssub.s32 %s20, %s34
      %s69 = sor.u32 %s67, %s68
      %p70 = scmp.eq.s32.totalorder %s69, 0
      %s72 = sadd.s32 %s71, 1
      %s73 = scalar_select %p70, %s71, %s72
      %p76 = pneg %p70
      %p77 = scmp.eq.s32.totalorder %s12, 1
      %p78 = por %p76, %p77
      %p79 = scmp.ne.s32.totalorder %s71, %s74
      %p80 = scmp.eq.s32.totalorder %s12, 0
      %p81 = por %p79, %p80
      %p82 = scmp.ne.s32.totalorder %s71, %s74
      %p83 = scmp.eq.s32.totalorder %s17, 1
      %p84 = por %p82, %p83
      %p85 = scmp.ne.s32.totalorder %s74, %s75
      %p86 = scmp.eq.s32.totalorder %s17, 0
      %p87 = por %p85, %p86
      %p88 = scmp.ne.s32.totalorder %s74, %s75
      %p89 = scmp.eq.s32.totalorder %s18, 1
      %p90 = por %p88, %p89
      %p92 = scmp.ne.s32.totalorder %s75, %s91
      %p93 = scmp.eq.s32.totalorder %s18, 0
      %p94 = por %p92, %p93
      %s95 = ssub.s32 %s20, %s34
      %p96 = scmp.eq.s32.totalorder %s95, 0
      %s98 = sadd.s32 %s97, 1
      %s99 = scalar_select %p96, %s97, %s98
      %p102 = pneg %p96
      %p103 = scmp.eq.s32.totalorder %s12, 1
      %p104 = por %p102, %p103
      %p105 = scmp.ne.s32.totalorder %s97, %s100
      %p106 = scmp.eq.s32.totalorder %s12, 0
      %p107 = por %p105, %p106
      %p108 = scmp.ne.s32.totalorder %s97, %s100
      %p109 = scmp.eq.s32.totalorder %s17, 1
      %p110 = por %p108, %p109
      %p111 = scmp.ne.s32.totalorder %s100, %s101
      %p112 = scmp.eq.s32.totalorder %s17, 0
      %p113 = por %p111, %p112
      %p114 = scmp.ne.s32.totalorder %s100, %s101
      %p115 = scmp.eq.s32.totalorder %s18, 1
      %p116 = por %p114, %p115
      %p118 = scmp.ne.s32.totalorder %s101, %s117
      %p119 = scmp.eq.s32.totalorder %s18, 0
      %p120 = por %p118, %p119
      %s121 = ssub.s32 %s19, %s38
      %s122 = ssub.s32 %s20, %s34
      %s123 = sor.u32 %s121, %s122
      %p124 = scmp.eq.s32.totalorder %s123, 0
      %s126 = sadd.s32 %s125, 1
      %s127 = scalar_select %p124, %s125, %s126
      %p130 = pneg %p124
      %p131 = scmp.eq.s32.totalorder %s12, 1
      %p132 = por %p130, %p131
      %p133 = scmp.ne.s32.totalorder %s125, %s128
      %p134 = scmp.eq.s32.totalorder %s12, 0
      %p135 = por %p133, %p134
      %p136 = scmp.ne.s32.totalorder %s125, %s128
      %p137 = scmp.eq.s32.totalorder %s17, 1
      %p138 = por %p136, %p137
      %p139 = scmp.ne.s32.totalorder %s128, %s129
      %p140 = scmp.eq.s32.totalorder %s17, 0
      %p141 = por %p139, %p140
      %p142 = scmp.ne.s32.totalorder %s128, %s129
      %p143 = scmp.eq.s32.totalorder %s18, 1
      %p144 = por %p142, %p143
      %p146 = scmp.ne.s32.totalorder %s129, %s145
      %p147 = scmp.eq.s32.totalorder %s18, 0
      %p148 = por %p146, %p147
      %p149 = scmp.le.s32.totalorder 1, %s12
      %p150 = scmp.lt.s32.totalorder %s12, 3
      %p151 = pnand %p149, %p150
      %p152 = pneg %p151
      // Predicated region
      $region9: #{_lambda_.1} parent=5 // pred_check
        _
      $region10: #{_lambda_.1} parent=5 // pred_check_branch
        %154 = sbr.rel (%p151) target = $region12
      $region11: #{_lambda_.1} parent=5 // pred_region
        %s155 = ssub.s32 %s12, 1
        // Predicated region
        $region13: #{_lambda_.1} parent=11 // pred_check
          %p156 = pneg %p87
        $region14: #{_lambda_.1} parent=11 // pred_check_branch
          %158 = sbr.rel (%p156) target = $region16
        $region15: #{_lambda_.1} parent=11 // pred_region
          %s159 = smul.u32 32, %s24
          %p160 = scmp.lt.s32.totalorder %s159, 31
          %s161 = scalar_select %p160, %s159, 31
          %p162 = scmp.lt.s32.totalorder %s23, 0
          %s163 = scalar_select %p162, %s23, 0
          %s164 = sadd.s32 %s163, %s161
          %s165 = smul.addr %s164, 4
          %s166 = scalar_lea.vmem %s1, %s165
          %s167 = smul.u32 32, %s24
        $region16: #{_lambda_.1} parent=11 // pred_fallthru
          _
        // Predicated region
        $region17: #{_lambda_.1} parent=11 // pred_check
          %p168 = pneg %p113
        $region18: #{_lambda_.1} parent=11 // pred_check_branch
          %170 = sbr.rel (%p168) target = $region20
        $region19: #{_lambda_.1} parent=11 // pred_region
          %p171 = scmp.lt.s32.totalorder %s23, 0
          %s172 = scalar_select %p171, %s23, 0
          %s173 = scalar_lea.vmem %s2, %s172
        $region20: #{_lambda_.1} parent=11 // pred_fallthru
          _
      $region12: #{_lambda_.1} parent=5 // pred_fallthru
        _
      %p174 = scmp.lt.s32.totalorder %s12, 2
      // Predicated region
      $region21: #{_lambda_.1} parent=5 // pred_check
        %p175 = pneg %p174
      $region22: #{_lambda_.1} parent=5 // pred_check_branch
        %177 = sbr.rel (%p175) target = $region24
      $region23: #{_lambda_.1} parent=5 // pred_region
        // Predicated region
        $region25: #{_lambda_.1} parent=23 // pred_check
          %p178 = pneg %p53
        $region26: #{_lambda_.1} parent=23 // pred_check_branch
          %180 = sbr.rel (%p178) target = $region28
        $region27: #{_lambda_.1} parent=23 // pred_region
          %s181 = smul.u32 64, %s19
          %s182 = smul.u32 2, %s21
          %p183 = scmp.lt.s32.totalorder %s181, 127
          %s184 = scalar_select %p183, %s181, 127
          %p185 = scmp.lt.s32.totalorder %s182, 1
          %s186 = scalar_select %p185, %s182, 1
          %s187 = smul.addr %s184, 2
          %s188 = sadd.s32 %s186, %s187
          %s189 = smul.addr %s188, 4
          %s190 = scalar_lea.vmem %s0, %s189
          %s191 = smul.u32 64, %s19
          %s192 = smul.u32 2, %s21
        $region28: #{_lambda_.1} parent=23 // pred_fallthru
          _
      $region24: #{_lambda_.1} parent=5 // pred_fallthru
        _
      %p193 = scmp.le.s32.totalorder 1, %s12
      %p194 = scmp.lt.s32.totalorder %s12, 3
      %p195 = pnand %p193, %p194
      %p196 = pneg %p195
      // Predicated region
      $region29: #{_lambda_.1} parent=5 // pred_check
        _
      $region30: #{_lambda_.1} parent=5 // pred_check_branch
        %198 = sbr.rel (%p195) target = $region32
      $region31: #{_lambda_.1} parent=5 // pred_region
        %s199 = ssub.s32 %s12, 1
        %s200 = smul.u32 64, %s22
        %s201 = smul.u32 2, %s24
        %p202 = scmp.lt.s32.totalorder %s200, 127
        %s203 = scalar_select %p202, %s200, 127
        %p204 = scmp.lt.s32.totalorder %s201, 1
        %s205 = scalar_select %p204, %s201, 1
        %s206 = smul.addr %s203, 2
        %s207 = sadd.s32 %s205, %s206
        %s208 = smul.addr %s207, 4
        %s209 = scalar_lea.vmem %s0, %s208
        %p210 = pneg %p59
        %p211 = pneg %p56
        %s212 = smul.u32 32, %s24
        %p213 = scmp.lt.s32.totalorder %s212, 31
        %s214 = scalar_select %p213, %s212, 31
        %p215 = scmp.lt.s32.totalorder %s23, 0
        %s216 = scalar_select %p215, %s23, 0
        %s217 = sadd.s32 %s216, %s214
        %s218 = smul.addr %s217, 4
        %s219 = scalar_lea.vmem %s1, %s218
        %p220 = pneg %p87
        %p221 = pneg %p84
        %p222 = scmp.lt.s32.totalorder %s23, 0
        %s223 = scalar_select %p222, %s23, 0
        %s224 = scalar_lea.vmem %s2, %s223
        %p225 = pneg %p113
        %p226 = pneg %p110
        %p227 = pneg %p141
        %p228 = pneg %p138
        %s229 = sand.u32 %s128, 1
        %s230 = scalar_lea.sflag [#allocation3], %s229
        %s231 = sand.u32 %s128, 1
        %s232 = smul.addr %s231, 512
        %s233 = scalar_lea.vmem [#allocation2], %s232
        %s234 = smul.u32 64, %s22
        %s235 = smul.u32 2, %s24
        %p236 = scmp.lt.s32.totalorder %s234, 127
        %s237 = scalar_select %p236, %s234, 127
        %p238 = scmp.lt.s32.totalorder %s235, 1
        %s239 = scalar_select %p238, %s235, 1
        %s240 = smul.addr %s237, 2
        %s241 = sadd.s32 %s239, %s240
        %s242 = smul.addr %s241, 4
        %s243 = scalar_lea.vmem %s0, %s242
        %s244 = smul.u32 64, %s22
        %s245 = smul.u32 2, %s24
        %s246 = smul.u32 32, %s24
        %p247 = scmp.lt.s32.totalorder %s246, 31
        %s248 = scalar_select %p247, %s246, 31
        %p249 = scmp.lt.s32.totalorder %s23, 0
        %s250 = scalar_select %p249, %s23, 0
        %s251 = sadd.s32 %s250, %s248
        %s252 = smul.addr %s251, 4
        %s253 = scalar_lea.vmem %s1, %s252
        %s254 = smul.u32 32, %s24
        %p255 = scmp.lt.s32.totalorder %s23, 0
        %s256 = scalar_select %p255, %s23, 0
        %s257 = scalar_lea.vmem %s2, %s256
        %s258 = smul.u32 64, %s22
        %v260 = vld [vmem:[%s243] sm:$0xff]
        %v261 = vld [vmem:[%s243 + $0x8] sm:$0xff]
        %v262 = vld [vmem:[%s243 + $0x10] sm:$0xff]
        %v263 = vld [vmem:[%s243 + $0x18] sm:$0xff]
        %v264 = vld [vmem:[%s243 + $0x20] sm:$0xff]
        %v265 = vld [vmem:[%s243 + $0x28] sm:$0xff]
        %v266 = vld [vmem:[%s243 + $0x30] sm:$0xff]
        %v267 = vld [vmem:[%s243 + $0x38] sm:$0xff]
        %v268 = vld [vmem:[%s243 + $0x40] sm:$0xff]
        %v269 = vld [vmem:[%s243 + $0x48] sm:$0xff]
        %v270 = vld [vmem:[%s243 + $0x50] sm:$0xff]
        %v271 = vld [vmem:[%s243 + $0x58] sm:$0xff]
        %v272 = vld [vmem:[%s243 + $0x60] sm:$0xff]
        %v273 = vld [vmem:[%s243 + $0x68] sm:$0xff]
        %v274 = vld [vmem:[%s243 + $0x70] sm:$0xff]
        %v275 = vld [vmem:[%s243 + $0x78] sm:$0xff]
        %v276 = vld [vmem:[%s243 + $0x80] sm:$0xff]
        %v277 = vld [vmem:[%s243 + $0x88] sm:$0xff]
        %v278 = vld [vmem:[%s243 + $0x90] sm:$0xff]
        %v279 = vld [vmem:[%s243 + $0x98] sm:$0xff]
        %v280 = vld [vmem:[%s243 + $0xa0] sm:$0xff]
        %v281 = vld [vmem:[%s243 + $0xa8] sm:$0xff]
        %v282 = vld [vmem:[%s243 + $0xb0] sm:$0xff]
        %v283 = vld [vmem:[%s243 + $0xb8] sm:$0xff]
        %v284 = vld [vmem:[%s243 + $0xc0] sm:$0xff]
        %v285 = vld [vmem:[%s243 + $0xc8] sm:$0xff]
        %v286 = vld [vmem:[%s243 + $0xd0] sm:$0xff]
        %v287 = vld [vmem:[%s243 + $0xd8] sm:$0xff]
        %v288 = vld [vmem:[%s243 + $0xe0] sm:$0xff]
        %v289 = vld [vmem:[%s243 + $0xe8] sm:$0xff]
        %v290 = vld [vmem:[%s243 + $0xf0] sm:$0xff]
        %v291 = vld [vmem:[%s243 + $0xf8] sm:$0xff]
        %v292 = vld [vmem:[%s243 + $0x100] sm:$0xff]
        %v293 = vld [vmem:[%s243 + $0x108] sm:$0xff]
        %v294 = vld [vmem:[%s243 + $0x110] sm:$0xff]
        %v295 = vld [vmem:[%s243 + $0x118] sm:$0xff]
        %v296 = vld [vmem:[%s243 + $0x120] sm:$0xff]
        %v297 = vld [vmem:[%s243 + $0x128] sm:$0xff]
        %v298 = vld [vmem:[%s243 + $0x130] sm:$0xff]
        %v299 = vld [vmem:[%s243 + $0x138] sm:$0xff]
        %v300 = vld [vmem:[%s243 + $0x140] sm:$0xff]
        %v301 = vld [vmem:[%s243 + $0x148] sm:$0xff]
        %v302 = vld [vmem:[%s243 + $0x150] sm:$0xff]
        %v303 = vld [vmem:[%s243 + $0x158] sm:$0xff]
        %v304 = vld [vmem:[%s243 + $0x160] sm:$0xff]
        %v305 = vld [vmem:[%s243 + $0x168] sm:$0xff]
        %v306 = vld [vmem:[%s243 + $0x170] sm:$0xff]
        %v307 = vld [vmem:[%s243 + $0x178] sm:$0xff]
        %v308 = vld [vmem:[%s243 + $0x180] sm:$0xff]
        %v309 = vld [vmem:[%s243 + $0x188] sm:$0xff]
        %v310 = vld [vmem:[%s243 + $0x190] sm:$0xff]
        %v311 = vld [vmem:[%s243 + $0x198] sm:$0xff]
        %v312 = vld [vmem:[%s243 + $0x1a0] sm:$0xff]
        %v313 = vld [vmem:[%s243 + $0x1a8] sm:$0xff]
        %v314 = vld [vmem:[%s243 + $0x1b0] sm:$0xff]
        %v315 = vld [vmem:[%s243 + $0x1b8] sm:$0xff]
        %v316 = vld [vmem:[%s243 + $0x1c0] sm:$0xff]
        %v317 = vld [vmem:[%s243 + $0x1c8] sm:$0xff]
        %v318 = vld [vmem:[%s243 + $0x1d0] sm:$0xff]
        %v319 = vld [vmem:[%s243 + $0x1d8] sm:$0xff]
        %v320 = vld [vmem:[%s243 + $0x1e0] sm:$0xff]
        %v321 = vld [vmem:[%s243 + $0x1e8] sm:$0xff]
        %v322 = vld [vmem:[%s243 + $0x1f0] sm:$0xff]
        %v323 = vld [vmem:[%s243 + $0x1f8] sm:$0xff]
        %v324 = vld [vmem:[%s253] sm:$0xf]
        %v325 = vld [vmem:[%s253 + $0x4] sm:$0xf]
        %v326 = vld [vmem:[%s253 + $0x8] sm:$0xf]
        %v327 = vld [vmem:[%s253 + $0xc] sm:$0xf]
        %v328 = vld [vmem:[%s253 + $0x10] sm:$0xf]
        %v329 = vld [vmem:[%s253 + $0x14] sm:$0xf]
        %v330 = vld [vmem:[%s253 + $0x18] sm:$0xf]
        %v331 = vld [vmem:[%s253 + $0x1c] sm:$0xf]
        %v332 = vld [vmem:[%s253 + $0x20] sm:$0xf]
        %v333 = vld [vmem:[%s253 + $0x24] sm:$0xf]
        %v334 = vld [vmem:[%s253 + $0x28] sm:$0xf]
        %v335 = vld [vmem:[%s253 + $0x2c] sm:$0xf]
        %v336 = vld [vmem:[%s253 + $0x30] sm:$0xf]
        %v337 = vld [vmem:[%s253 + $0x34] sm:$0xf]
        %v338 = vld [vmem:[%s253 + $0x38] sm:$0xf]
        %v339 = vld [vmem:[%s253 + $0x3c] sm:$0xf]
        %v340 = vld [vmem:[%s253 + $0x40] sm:$0xf]
        %v341 = vld [vmem:[%s253 + $0x44] sm:$0xf]
        %v342 = vld [vmem:[%s253 + $0x48] sm:$0xf]
        %v343 = vld [vmem:[%s253 + $0x4c] sm:$0xf]
        %v344 = vld [vmem:[%s253 + $0x50] sm:$0xf]
        %v345 = vld [vmem:[%s253 + $0x54] sm:$0xf]
        %v346 = vld [vmem:[%s253 + $0x58] sm:$0xf]
        %v347 = vld [vmem:[%s253 + $0x5c] sm:$0xf]
        %v348 = vld [vmem:[%s253 + $0x60] sm:$0xf]
        %v349 = vld [vmem:[%s253 + $0x64] sm:$0xf]
        %v350 = vld [vmem:[%s253 + $0x68] sm:$0xf]
        %v351 = vld [vmem:[%s253 + $0x6c] sm:$0xf]
        %v352 = vld [vmem:[%s253 + $0x70] sm:$0xf]
        %v353 = vld [vmem:[%s253 + $0x74] sm:$0xf]
        %v354 = vld [vmem:[%s253 + $0x78] sm:$0xf]
        %v355 = vld [vmem:[%s253 + $0x7c] sm:$0xf]
        %v356 = vld [vmem:[%s257] sm:$0x1]
        %v358 = vlaneseq
        %v359 = vshrl.u32 %v358, 7
        %v360 = vsub.s32 0, %v359
        %v361 = vrot.slane %v356, %v360
        %v427 = vunpack.c.l.b16 %v260
        %v428 = vunpack.c.h.b16 %v260
        %v429 = vunpack.c.l.b16 %v261
        %v430 = vunpack.c.h.b16 %v261
        %v431 = vunpack.c.l.b16 %v262
        %v432 = vunpack.c.h.b16 %v262
        %v433 = vunpack.c.l.b16 %v263
        %v434 = vunpack.c.h.b16 %v263
        %v435 = vunpack.c.l.b16 %v264
        %v436 = vunpack.c.h.b16 %v264
        %v437 = vunpack.c.l.b16 %v265
        %v438 = vunpack.c.h.b16 %v265
        %v439 = vunpack.c.l.b16 %v266
        %v440 = vunpack.c.h.b16 %v266
        %v441 = vunpack.c.l.b16 %v267
        %v442 = vunpack.c.h.b16 %v267
        %v443 = vunpack.c.l.b16 %v268
        %v444 = vunpack.c.h.b16 %v268
        %v445 = vunpack.c.l.b16 %v269
        %v446 = vunpack.c.h.b16 %v269
        %v447 = vunpack.c.l.b16 %v270
        %v448 = vunpack.c.h.b16 %v270
        %v449 = vunpack.c.l.b16 %v271
        %v450 = vunpack.c.h.b16 %v271
        %v451 = vunpack.c.l.b16 %v272
        %v452 = vunpack.c.h.b16 %v272
        %v453 = vunpack.c.l.b16 %v273
        %v454 = vunpack.c.h.b16 %v273
        %v455 = vunpack.c.l.b16 %v274
        %v456 = vunpack.c.h.b16 %v274
        %v457 = vunpack.c.l.b16 %v275
        %v458 = vunpack.c.h.b16 %v275
        %v459 = vunpack.c.l.b16 %v276
        %v460 = vunpack.c.h.b16 %v276
        %v461 = vunpack.c.l.b16 %v277
        %v462 = vunpack.c.h.b16 %v277
        %v463 = vunpack.c.l.b16 %v278
        %v464 = vunpack.c.h.b16 %v278
        %v465 = vunpack.c.l.b16 %v279
        %v466 = vunpack.c.h.b16 %v279
        %v467 = vunpack.c.l.b16 %v280
        %v468 = vunpack.c.h.b16 %v280
        %v469 = vunpack.c.l.b16 %v281
        %v470 = vunpack.c.h.b16 %v281
        %v471 = vunpack.c.l.b16 %v282
        %v472 = vunpack.c.h.b16 %v282
        %v473 = vunpack.c.l.b16 %v283
        %v474 = vunpack.c.h.b16 %v283
        %v475 = vunpack.c.l.b16 %v284
        %v476 = vunpack.c.h.b16 %v284
        %v477 = vunpack.c.l.b16 %v285
        %v478 = vunpack.c.h.b16 %v285
        %v479 = vunpack.c.l.b16 %v286
        %v480 = vunpack.c.h.b16 %v286
        %v481 = vunpack.c.l.b16 %v287
        %v482 = vunpack.c.h.b16 %v287
        %v483 = vunpack.c.l.b16 %v288
        %v484 = vunpack.c.h.b16 %v288
        %v485 = vunpack.c.l.b16 %v289
        %v486 = vunpack.c.h.b16 %v289
        %v487 = vunpack.c.l.b16 %v290
        %v488 = vunpack.c.h.b16 %v290
        %v489 = vunpack.c.l.b16 %v291
        %v490 = vunpack.c.h.b16 %v291
        %v491 = vunpack.c.l.b16 %v292
        %v492 = vunpack.c.h.b16 %v292
        %v493 = vunpack.c.l.b16 %v293
        %v494 = vunpack.c.h.b16 %v293
        %v495 = vunpack.c.l.b16 %v294
        %v496 = vunpack.c.h.b16 %v294
        %v497 = vunpack.c.l.b16 %v295
        %v498 = vunpack.c.h.b16 %v295
        %v499 = vunpack.c.l.b16 %v296
        %v500 = vunpack.c.h.b16 %v296
        %v501 = vunpack.c.l.b16 %v297
        %v502 = vunpack.c.h.b16 %v297
        %v503 = vunpack.c.l.b16 %v298
        %v504 = vunpack.c.h.b16 %v298
        %v505 = vunpack.c.l.b16 %v299
        %v506 = vunpack.c.h.b16 %v299
        %v507 = vunpack.c.l.b16 %v300
        %v508 = vunpack.c.h.b16 %v300
        %v509 = vunpack.c.l.b16 %v301
        %v510 = vunpack.c.h.b16 %v301
        %v511 = vunpack.c.l.b16 %v302
        %v512 = vunpack.c.h.b16 %v302
        %v513 = vunpack.c.l.b16 %v303
        %v514 = vunpack.c.h.b16 %v303
        %v515 = vunpack.c.l.b16 %v304
        %v516 = vunpack.c.h.b16 %v304
        %v517 = vunpack.c.l.b16 %v305
        %v518 = vunpack.c.h.b16 %v305
        %v519 = vunpack.c.l.b16 %v306
        %v520 = vunpack.c.h.b16 %v306
        %v521 = vunpack.c.l.b16 %v307
        %v522 = vunpack.c.h.b16 %v307
        %v523 = vunpack.c.l.b16 %v308
        %v524 = vunpack.c.h.b16 %v308
        %v525 = vunpack.c.l.b16 %v309
        %v526 = vunpack.c.h.b16 %v309
        %v527 = vunpack.c.l.b16 %v310
        %v528 = vunpack.c.h.b16 %v310
        %v529 = vunpack.c.l.b16 %v311
        %v530 = vunpack.c.h.b16 %v311
        %v531 = vunpack.c.l.b16 %v312
        %v532 = vunpack.c.h.b16 %v312
        %v533 = vunpack.c.l.b16 %v313
        %v534 = vunpack.c.h.b16 %v313
        %v535 = vunpack.c.l.b16 %v314
        %v536 = vunpack.c.h.b16 %v314
        %v537 = vunpack.c.l.b16 %v315
        %v538 = vunpack.c.h.b16 %v315
        %v539 = vunpack.c.l.b16 %v316
        %v540 = vunpack.c.h.b16 %v316
        %v541 = vunpack.c.l.b16 %v317
        %v542 = vunpack.c.h.b16 %v317
        %v543 = vunpack.c.l.b16 %v318
        %v544 = vunpack.c.h.b16 %v318
        %v545 = vunpack.c.l.b16 %v319
        %v546 = vunpack.c.h.b16 %v319
        %v547 = vunpack.c.l.b16 %v320
        %v548 = vunpack.c.h.b16 %v320
        %v549 = vunpack.c.l.b16 %v321
        %v550 = vunpack.c.h.b16 %v321
        %v551 = vunpack.c.l.b16 %v322
        %v552 = vunpack.c.h.b16 %v322
        %v553 = vunpack.c.l.b16 %v323
        %v554 = vunpack.c.h.b16 %v323
        %v555 = vpack.c.b16 %v429, %v427
        %v556 = vpack.c.b16 %v430, %v428
        %v557 = vpack.c.b16 %v433, %v431
        %v558 = vpack.c.b16 %v434, %v432
        %v559 = vpack.c.b16 %v437, %v435
        %v560 = vpack.c.b16 %v438, %v436
        %v561 = vpack.c.b16 %v441, %v439
        %v562 = vpack.c.b16 %v442, %v440
        %v563 = vpack.c.b16 %v445, %v443
        %v564 = vpack.c.b16 %v446, %v444
        %v565 = vpack.c.b16 %v449, %v447
        %v566 = vpack.c.b16 %v450, %v448
        %v567 = vpack.c.b16 %v453, %v451
        %v568 = vpack.c.b16 %v454, %v452
        %v569 = vpack.c.b16 %v457, %v455
        %v570 = vpack.c.b16 %v458, %v456
        %v571 = vpack.c.b16 %v461, %v459
        %v572 = vpack.c.b16 %v462, %v460
        %v573 = vpack.c.b16 %v465, %v463
        %v574 = vpack.c.b16 %v466, %v464
        %v575 = vpack.c.b16 %v469, %v467
        %v576 = vpack.c.b16 %v470, %v468
        %v577 = vpack.c.b16 %v473, %v471
        %v578 = vpack.c.b16 %v474, %v472
        %v579 = vpack.c.b16 %v477, %v475
        %v580 = vpack.c.b16 %v478, %v476
        %v581 = vpack.c.b16 %v481, %v479
        %v582 = vpack.c.b16 %v482, %v480
        %v583 = vpack.c.b16 %v485, %v483
        %v584 = vpack.c.b16 %v486, %v484
        %v585 = vpack.c.b16 %v489, %v487
        %v586 = vpack.c.b16 %v490, %v488
        %v587 = vpack.c.b16 %v493, %v491
        %v588 = vpack.c.b16 %v494, %v492
        %v589 = vpack.c.b16 %v497, %v495
        %v590 = vpack.c.b16 %v498, %v496
        %v591 = vpack.c.b16 %v501, %v499
        %v592 = vpack.c.b16 %v502, %v500
        %v593 = vpack.c.b16 %v505, %v503
        %v594 = vpack.c.b16 %v506, %v504
        %v595 = vpack.c.b16 %v509, %v507
        %v596 = vpack.c.b16 %v510, %v508
        %v597 = vpack.c.b16 %v513, %v511
        %v598 = vpack.c.b16 %v514, %v512
        %v599 = vpack.c.b16 %v517, %v515
        %v600 = vpack.c.b16 %v518, %v516
        %v601 = vpack.c.b16 %v521, %v519
        %v602 = vpack.c.b16 %v522, %v520
        %v603 = vpack.c.b16 %v525, %v523
        %v604 = vpack.c.b16 %v526, %v524
        %v605 = vpack.c.b16 %v529, %v527
        %v606 = vpack.c.b16 %v530, %v528
        %v607 = vpack.c.b16 %v533, %v531
        %v608 = vpack.c.b16 %v534, %v532
        %v609 = vpack.c.b16 %v537, %v535
        %v610 = vpack.c.b16 %v538, %v536
        %v611 = vpack.c.b16 %v541, %v539
        %v612 = vpack.c.b16 %v542, %v540
        %v613 = vpack.c.b16 %v545, %v543
        %v614 = vpack.c.b16 %v546, %v544
        %v615 = vpack.c.b16 %v549, %v547
        %v616 = vpack.c.b16 %v550, %v548
        %v617 = vpack.c.b16 %v553, %v551
        %v618 = vpack.c.b16 %v554, %v552
        %v715 = vunpack.c.l.b16 %v324
        %v716 = vunpack.c.l.b16 %v325
        %v717 = vunpack.c.l.b16 %v326
        %v718 = vunpack.c.l.b16 %v327
        %v719 = vunpack.c.l.b16 %v328
        %v720 = vunpack.c.l.b16 %v329
        %v721 = vunpack.c.l.b16 %v330
        %v722 = vunpack.c.l.b16 %v331
        %v723 = vunpack.c.l.b16 %v332
        %v724 = vunpack.c.l.b16 %v333
        %v725 = vunpack.c.l.b16 %v334
        %v726 = vunpack.c.l.b16 %v335
        %v727 = vunpack.c.l.b16 %v336
        %v728 = vunpack.c.l.b16 %v337
        %v729 = vunpack.c.l.b16 %v338
        %v730 = vunpack.c.l.b16 %v339
        %v731 = vunpack.c.l.b16 %v340
        %v732 = vunpack.c.l.b16 %v341
        %v733 = vunpack.c.l.b16 %v342
        %v734 = vunpack.c.l.b16 %v343
        %v735 = vunpack.c.l.b16 %v344
        %v736 = vunpack.c.l.b16 %v345
        %v737 = vunpack.c.l.b16 %v346
        %v738 = vunpack.c.l.b16 %v347
        %v739 = vunpack.c.l.b16 %v348
        %v740 = vunpack.c.l.b16 %v349
        %v741 = vunpack.c.l.b16 %v350
        %v742 = vunpack.c.l.b16 %v351
        %v743 = vunpack.c.l.b16 %v352
        %v744 = vunpack.c.l.b16 %v353
        %v745 = vunpack.c.l.b16 %v354
        %v746 = vunpack.c.l.b16 %v355
        %v747 = vpack.c.b16 %v716, %v715
        %v748 = vpack.c.b16 %v718, %v717
        %v749 = vpack.c.b16 %v720, %v719
        %v750 = vpack.c.b16 %v722, %v721
        %v751 = vpack.c.b16 %v724, %v723
        %v752 = vpack.c.b16 %v726, %v725
        %v753 = vpack.c.b16 %v728, %v727
        %v754 = vpack.c.b16 %v730, %v729
        %v755 = vpack.c.b16 %v732, %v731
        %v756 = vpack.c.b16 %v734, %v733
        %v757 = vpack.c.b16 %v736, %v735
        %v758 = vpack.c.b16 %v738, %v737
        %v759 = vpack.c.b16 %v740, %v739
        %v760 = vpack.c.b16 %v742, %v741
        %v761 = vpack.c.b16 %v744, %v743
        %v762 = vpack.c.b16 %v746, %v745
        %779 = vmatprep.subr.bf16.mxu0 0
        %780 = vmatpush1.bf16.msra.mxu0 %v754
        %781 = vmatprep.subr.bf16.mxu0 0
        %782 = vmatpush1.bf16.msra.mxu0 %v753
        %783 = vmatprep.subr.bf16.mxu0 0
        %784 = vmatpush1.bf16.msra.mxu0 %v752
        %785 = vmatprep.subr.bf16.mxu0 0
        %786 = vmatpush1.bf16.msra.mxu0 %v751
        %787 = vmatprep.subr.bf16.mxu0 0
        %788 = vmatpush1.bf16.msra.mxu0 %v750
        %789 = vmatprep.subr.bf16.mxu0 0
        %790 = vmatpush1.bf16.msra.mxu0 %v749
        %791 = vmatprep.subr.bf16.mxu0 0
        %792 = vmatpush1.bf16.msra.mxu0 %v748
        %793 = vmatprep.subr.bf16.mxu0 0
        %794 = vmatpush1.bf16.msra.mxu0 %v747
        %795 = vmatprep.subr.bf16.mxu0 0
        %796 = vmatpush2.bf16.msra.mxu0 %v762
        %797 = vmatprep.subr.bf16.mxu0 0
        %798 = vmatpush2.bf16.msra.mxu0 %v761
        %799 = vmatprep.subr.bf16.mxu0 0
        %800 = vmatpush2.bf16.msra.mxu0 %v760
        %801 = vmatprep.subr.bf16.mxu0 0
        %802 = vmatpush2.bf16.msra.mxu0 %v759
        %803 = vmatprep.subr.bf16.mxu0 0
        %804 = vmatpush2.bf16.msra.mxu0 %v758
        %805 = vmatprep.subr.bf16.mxu0 0
        %806 = vmatpush2.bf16.msra.mxu0 %v757
        %807 = vmatprep.subr.bf16.mxu0 0
        %808 = vmatpush2.bf16.msra.mxu0 %v756
        %809 = vmatprep.subr.bf16.mxu0 0
        %810 = vmatpush2.bf16.msra.mxu0 %v755
        %811 = vmatprep.mubr.bf16.mxu0 %v556
        %812 = vmatmul.mubr.bf16.gmra.mxu0 %v555
        %v813 = vpop.f32.mrf.mxu0
        %v814 = vadd.f32 %v361, %v813
        %v815 = vpop.f32.mrf.mxu0
        %v816 = vpop.f32.mrf.mxu0
        %v817 = vadd.f32 %v361, %v816
        %v818 = vpop.f32.mrf.mxu0
        %819 = vmatprep.mubr.bf16.mxu0 %v558
        %820 = vmatmul.mubr.bf16.gmra.mxu0 %v557
        %v821 = vpop.f32.mrf.mxu0
        %v822 = vadd.f32 %v361, %v821
        %v823 = vpop.f32.mrf.mxu0
        %v824 = vpop.f32.mrf.mxu0
        %v825 = vadd.f32 %v361, %v824
        %v826 = vpop.f32.mrf.mxu0
        %827 = vmatprep.mubr.bf16.mxu0 %v560
        %828 = vmatmul.mubr.bf16.gmra.mxu0 %v559
        %v829 = vpop.f32.mrf.mxu0
        %v830 = vadd.f32 %v361, %v829
        %v831 = vpop.f32.mrf.mxu0
        %v832 = vpop.f32.mrf.mxu0
        %v833 = vadd.f32 %v361, %v832
        %v834 = vpop.f32.mrf.mxu0
        %835 = vmatprep.mubr.bf16.mxu0 %v562
        %836 = vmatmul.mubr.bf16.gmra.mxu0 %v561
        %v837 = vpop.f32.mrf.mxu0
        %v838 = vadd.f32 %v361, %v837
        %v839 = vpop.f32.mrf.mxu0
        %v840 = vpop.f32.mrf.mxu0
        %v841 = vadd.f32 %v361, %v840
        %v842 = vpop.f32.mrf.mxu0
        %843 = vmatprep.mubr.bf16.mxu0 %v564
        %844 = vmatmul.mubr.bf16.gmra.mxu0 %v563
        %v845 = vpop.f32.mrf.mxu0
        %v846 = vadd.f32 %v361, %v845
        %v847 = vpop.f32.mrf.mxu0
        %v848 = vpop.f32.mrf.mxu0
        %v849 = vadd.f32 %v361, %v848
        %v850 = vpop.f32.mrf.mxu0
        %851 = vmatprep.mubr.bf16.mxu0 %v566
        %852 = vmatmul.mubr.bf16.gmra.mxu0 %v565
        %v853 = vpop.f32.mrf.mxu0
        %v854 = vadd.f32 %v361, %v853
        %v855 = vpop.f32.mrf.mxu0
        %v856 = vpop.f32.mrf.mxu0
        %v857 = vadd.f32 %v361, %v856
        %v858 = vpop.f32.mrf.mxu0
        %859 = vmatprep.mubr.bf16.mxu0 %v568
        %860 = vmatmul.mubr.bf16.gmra.mxu0 %v567
        %v861 = vpop.f32.mrf.mxu0
        %v862 = vadd.f32 %v361, %v861
        %v863 = vpop.f32.mrf.mxu0
        %v864 = vpop.f32.mrf.mxu0
        %v865 = vadd.f32 %v361, %v864
        %v866 = vpop.f32.mrf.mxu0
        %867 = vmatprep.mubr.bf16.mxu0 %v570
        %868 = vmatmul.mubr.bf16.gmra.mxu0 %v569
        %v869 = vpop.f32.mrf.mxu0
        %v870 = vadd.f32 %v361, %v869
        %v871 = vpop.f32.mrf.mxu0
        %v872 = vpop.f32.mrf.mxu0
        %v873 = vadd.f32 %v361, %v872
        %v874 = vpop.f32.mrf.mxu0
        %875 = vmatprep.mubr.bf16.mxu0 %v572
        %876 = vmatmul.mubr.bf16.gmra.mxu0 %v571
        %v877 = vpop.f32.mrf.mxu0
        %v878 = vadd.f32 %v361, %v877
        %v879 = vpop.f32.mrf.mxu0
        %v880 = vpop.f32.mrf.mxu0
        %v881 = vadd.f32 %v361, %v880
        %v882 = vpop.f32.mrf.mxu0
        %883 = vmatprep.mubr.bf16.mxu0 %v574
        %884 = vmatmul.mubr.bf16.gmra.mxu0 %v573
        %v885 = vpop.f32.mrf.mxu0
        %v886 = vadd.f32 %v361, %v885
        %v887 = vpop.f32.mrf.mxu0
        %v888 = vpop.f32.mrf.mxu0
        %v889 = vadd.f32 %v361, %v888
        %v890 = vpop.f32.mrf.mxu0
        %891 = vmatprep.mubr.bf16.mxu0 %v576
        %892 = vmatmul.mubr.bf16.gmra.mxu0 %v575
        %v893 = vpop.f32.mrf.mxu0
        %v894 = vadd.f32 %v361, %v893
        %v895 = vpop.f32.mrf.mxu0
        %v896 = vpop.f32.mrf.mxu0
        %v897 = vadd.f32 %v361, %v896
        %v898 = vpop.f32.mrf.mxu0
        %899 = vmatprep.mubr.bf16.mxu0 %v578
        %900 = vmatmul.mubr.bf16.gmra.mxu0 %v577
        %v901 = vpop.f32.mrf.mxu0
        %v902 = vadd.f32 %v361, %v901
        %v903 = vpop.f32.mrf.mxu0
        %v904 = vpop.f32.mrf.mxu0
        %v905 = vadd.f32 %v361, %v904
        %v906 = vpop.f32.mrf.mxu0
        %907 = vmatprep.mubr.bf16.mxu0 %v580
        %908 = vmatmul.mubr.bf16.gmra.mxu0 %v579
        %v909 = vpop.f32.mrf.mxu0
        %v910 = vadd.f32 %v361, %v909
        %v911 = vpop.f32.mrf.mxu0
        %v912 = vpop.f32.mrf.mxu0
        %v913 = vadd.f32 %v361, %v912
        %v914 = vpop.f32.mrf.mxu0
        %915 = vmatprep.mubr.bf16.mxu0 %v582
        %916 = vmatmul.mubr.bf16.gmra.mxu0 %v581
        %v917 = vpop.f32.mrf.mxu0
        %v918 = vadd.f32 %v361, %v917
        %v919 = vpop.f32.mrf.mxu0
        %v920 = vpop.f32.mrf.mxu0
        %v921 = vadd.f32 %v361, %v920
        %v922 = vpop.f32.mrf.mxu0
        %923 = vmatprep.mubr.bf16.mxu0 %v584
        %924 = vmatmul.mubr.bf16.gmra.mxu0 %v583
        %v925 = vpop.f32.mrf.mxu0
        %v926 = vadd.f32 %v361, %v925
        %v927 = vpop.f32.mrf.mxu0
        %v928 = vpop.f32.mrf.mxu0
        %v929 = vadd.f32 %v361, %v928
        %v930 = vpop.f32.mrf.mxu0
        %931 = vmatprep.mubr.bf16.mxu0 %v586
        %932 = vmatmul.mubr.bf16.gmra.mxu0 %v585
        %v933 = vpop.f32.mrf.mxu0
        %v934 = vadd.f32 %v361, %v933
        %v935 = vpop.f32.mrf.mxu0
        %v936 = vpop.f32.mrf.mxu0
        %v937 = vadd.f32 %v361, %v936
        %v938 = vpop.f32.mrf.mxu0
        %939 = vmatprep.mubr.bf16.mxu0 %v588
        %940 = vmatmul.mubr.bf16.gmra.mxu0 %v587
        %v941 = vpop.f32.mrf.mxu0
        %v942 = vadd.f32 %v361, %v941
        %v943 = vpop.f32.mrf.mxu0
        %v944 = vpop.f32.mrf.mxu0
        %v945 = vadd.f32 %v361, %v944
        %v946 = vpop.f32.mrf.mxu0
        %947 = vmatprep.mubr.bf16.mxu0 %v590
        %948 = vmatmul.mubr.bf16.gmra.mxu0 %v589
        %v949 = vpop.f32.mrf.mxu0
        %v950 = vadd.f32 %v361, %v949
        %v951 = vpop.f32.mrf.mxu0
        %v952 = vpop.f32.mrf.mxu0
        %v953 = vadd.f32 %v361, %v952
        %v954 = vpop.f32.mrf.mxu0
        %955 = vmatprep.mubr.bf16.mxu0 %v592
        %956 = vmatmul.mubr.bf16.gmra.mxu0 %v591
        %v957 = vpop.f32.mrf.mxu0
        %v958 = vadd.f32 %v361, %v957
        %v959 = vpop.f32.mrf.mxu0
        %v960 = vpop.f32.mrf.mxu0
        %v961 = vadd.f32 %v361, %v960
        %v962 = vpop.f32.mrf.mxu0
        %963 = vmatprep.mubr.bf16.mxu0 %v594
        %964 = vmatmul.mubr.bf16.gmra.mxu0 %v593
        %v965 = vpop.f32.mrf.mxu0
        %v966 = vadd.f32 %v361, %v965
        %v967 = vpop.f32.mrf.mxu0
        %v968 = vpop.f32.mrf.mxu0
        %v969 = vadd.f32 %v361, %v968
        %v970 = vpop.f32.mrf.mxu0
        %971 = vmatprep.mubr.bf16.mxu0 %v596
        %972 = vmatmul.mubr.bf16.gmra.mxu0 %v595
        %v973 = vpop.f32.mrf.mxu0
        %v974 = vadd.f32 %v361, %v973
        %v975 = vpop.f32.mrf.mxu0
        %v976 = vpop.f32.mrf.mxu0
        %v977 = vadd.f32 %v361, %v976
        %v978 = vpop.f32.mrf.mxu0
        %979 = vmatprep.mubr.bf16.mxu0 %v598
        %980 = vmatmul.mubr.bf16.gmra.mxu0 %v597
        %v981 = vpop.f32.mrf.mxu0
        %v982 = vadd.f32 %v361, %v981
        %v983 = vpop.f32.mrf.mxu0
        %v984 = vpop.f32.mrf.mxu0
        %v985 = vadd.f32 %v361, %v984
        %v986 = vpop.f32.mrf.mxu0
        %987 = vmatprep.mubr.bf16.mxu0 %v600
        %988 = vmatmul.mubr.bf16.gmra.mxu0 %v599
        %v989 = vpop.f32.mrf.mxu0
        %v990 = vadd.f32 %v361, %v989
        %v991 = vpop.f32.mrf.mxu0
        %v992 = vpop.f32.mrf.mxu0
        %v993 = vadd.f32 %v361, %v992
        %v994 = vpop.f32.mrf.mxu0
        %995 = vmatprep.mubr.bf16.mxu0 %v602
        %996 = vmatmul.mubr.bf16.gmra.mxu0 %v601
        %v997 = vpop.f32.mrf.mxu0
        %v998 = vadd.f32 %v361, %v997
        %v999 = vpop.f32.mrf.mxu0
        %v1000 = vpop.f32.mrf.mxu0
        %v1001 = vadd.f32 %v361, %v1000
        %v1002 = vpop.f32.mrf.mxu0
        %1003 = vmatprep.mubr.bf16.mxu0 %v604
        %1004 = vmatmul.mubr.bf16.gmra.mxu0 %v603
        %v1005 = vpop.f32.mrf.mxu0
        %v1006 = vadd.f32 %v361, %v1005
        %v1007 = vpop.f32.mrf.mxu0
        %v1008 = vpop.f32.mrf.mxu0
        %v1009 = vadd.f32 %v361, %v1008
        %v1010 = vpop.f32.mrf.mxu0
        %1011 = vmatprep.mubr.bf16.mxu0 %v606
        %1012 = vmatmul.mubr.bf16.gmra.mxu0 %v605
        %v1013 = vpop.f32.mrf.mxu0
        %v1014 = vadd.f32 %v361, %v1013
        %v1015 = vpop.f32.mrf.mxu0
        %v1016 = vpop.f32.mrf.mxu0
        %v1017 = vadd.f32 %v361, %v1016
        %v1018 = vpop.f32.mrf.mxu0
        %1019 = vmatprep.mubr.bf16.mxu0 %v608
        %1020 = vmatmul.mubr.bf16.gmra.mxu0 %v607
        %v1021 = vpop.f32.mrf.mxu0
        %v1022 = vadd.f32 %v361, %v1021
        %v1023 = vpop.f32.mrf.mxu0
        %v1024 = vpop.f32.mrf.mxu0
        %v1025 = vadd.f32 %v361, %v1024
        %v1026 = vpop.f32.mrf.mxu0
        %1027 = vmatprep.mubr.bf16.mxu0 %v610
        %1028 = vmatmul.mubr.bf16.gmra.mxu0 %v609
        %v1029 = vpop.f32.mrf.mxu0
        %v1030 = vadd.f32 %v361, %v1029
        %v1031 = vpop.f32.mrf.mxu0
        %v1032 = vpop.f32.mrf.mxu0
        %v1033 = vadd.f32 %v361, %v1032
        %v1034 = vpop.f32.mrf.mxu0
        %1035 = vmatprep.mubr.bf16.mxu0 %v612
        %1036 = vmatmul.mubr.bf16.gmra.mxu0 %v611
        %v1037 = vpop.f32.mrf.mxu0
        %v1038 = vadd.f32 %v361, %v1037
        %v1039 = vpop.f32.mrf.mxu0
        %v1040 = vpop.f32.mrf.mxu0
        %v1041 = vadd.f32 %v361, %v1040
        %v1042 = vpop.f32.mrf.mxu0
        %1043 = vmatprep.mubr.bf16.mxu0 %v614
        %1044 = vmatmul.mubr.bf16.gmra.mxu0 %v613
        %v1045 = vpop.f32.mrf.mxu0
        %v1046 = vadd.f32 %v361, %v1045
        %v1047 = vpop.f32.mrf.mxu0
        %v1048 = vpop.f32.mrf.mxu0
        %v1049 = vadd.f32 %v361, %v1048
        %v1050 = vpop.f32.mrf.mxu0
        %1051 = vmatprep.mubr.bf16.mxu0 %v616
        %1052 = vmatmul.mubr.bf16.gmra.mxu0 %v615
        %v1053 = vpop.f32.mrf.mxu0
        %v1054 = vadd.f32 %v361, %v1053
        %v1055 = vpop.f32.mrf.mxu0
        %v1056 = vpop.f32.mrf.mxu0
        %v1057 = vadd.f32 %v361, %v1056
        %v1058 = vpop.f32.mrf.mxu0
        %1059 = vmatprep.mubr.bf16.mxu0 %v618
        %1060 = vmatmul.mubr.bf16.gmra.mxu0 %v617
        %v1061 = vpop.f32.mrf.mxu0
        %v1062 = vadd.f32 %v361, %v1061
        %v1063 = vpop.f32.mrf.mxu0
        %v1064 = vpop.f32.mrf.mxu0
        %v1065 = vadd.f32 %v361, %v1064
        %v1066 = vpop.f32.mrf.mxu0
        %1067 = vdwg.mxu0
        %vm1068 = vcmp.gt.f32.partialorder %v814, 0.0
        %vm1069 = vcmp.gt.f32.partialorder %v817, 0.0
        %vm1070 = vcmp.gt.f32.partialorder %v822, 0.0
        %vm1071 = vcmp.gt.f32.partialorder %v825, 0.0
        %vm1072 = vcmp.gt.f32.partialorder %v830, 0.0
        %vm1073 = vcmp.gt.f32.partialorder %v833, 0.0
        %vm1074 = vcmp.gt.f32.partialorder %v838, 0.0
        %vm1075 = vcmp.gt.f32.partialorder %v841, 0.0
        %vm1076 = vcmp.gt.f32.partialorder %v846, 0.0
        %vm1077 = vcmp.gt.f32.partialorder %v849, 0.0
        %vm1078 = vcmp.gt.f32.partialorder %v854, 0.0
        %vm1079 = vcmp.gt.f32.partialorder %v857, 0.0
        %vm1080 = vcmp.gt.f32.partialorder %v862, 0.0
        %vm1081 = vcmp.gt.f32.partialorder %v865, 0.0
        %vm1082 = vcmp.gt.f32.partialorder %v870, 0.0
        %vm1083 = vcmp.gt.f32.partialorder %v873, 0.0
        %vm1084 = vcmp.gt.f32.partialorder %v878, 0.0
        %vm1085 = vcmp.gt.f32.partialorder %v881, 0.0
        %vm1086 = vcmp.gt.f32.partialorder %v886, 0.0
        %vm1087 = vcmp.gt.f32.partialorder %v889, 0.0
        %vm1088 = vcmp.gt.f32.partialorder %v894, 0.0
        %vm1089 = vcmp.gt.f32.partialorder %v897, 0.0
        %vm1090 = vcmp.gt.f32.partialorder %v902, 0.0
        %vm1091 = vcmp.gt.f32.partialorder %v905, 0.0
        %vm1092 = vcmp.gt.f32.partialorder %v910, 0.0
        %vm1093 = vcmp.gt.f32.partialorder %v913, 0.0
        %vm1094 = vcmp.gt.f32.partialorder %v918, 0.0
        %vm1095 = vcmp.gt.f32.partialorder %v921, 0.0
        %vm1096 = vcmp.gt.f32.partialorder %v926, 0.0
        %vm1097 = vcmp.gt.f32.partialorder %v929, 0.0
        %vm1098 = vcmp.gt.f32.partialorder %v934, 0.0
        %vm1099 = vcmp.gt.f32.partialorder %v937, 0.0
        %vm1100 = vcmp.gt.f32.partialorder %v942, 0.0
        %vm1101 = vcmp.gt.f32.partialorder %v945, 0.0
        %vm1102 = vcmp.gt.f32.partialorder %v950, 0.0
        %vm1103 = vcmp.gt.f32.partialorder %v953, 0.0
        %vm1104 = vcmp.gt.f32.partialorder %v958, 0.0
        %vm1105 = vcmp.gt.f32.partialorder %v961, 0.0
        %vm1106 = vcmp.gt.f32.partialorder %v966, 0.0
        %vm1107 = vcmp.gt.f32.partialorder %v969, 0.0
        %vm1108 = vcmp.gt.f32.partialorder %v974, 0.0
        %vm1109 = vcmp.gt.f32.partialorder %v977, 0.0
        %vm1110 = vcmp.gt.f32.partialorder %v982, 0.0
        %vm1111 = vcmp.gt.f32.partialorder %v985, 0.0
        %vm1112 = vcmp.gt.f32.partialorder %v990, 0.0
        %vm1113 = vcmp.gt.f32.partialorder %v993, 0.0
        %vm1114 = vcmp.gt.f32.partialorder %v998, 0.0
        %vm1115 = vcmp.gt.f32.partialorder %v1001, 0.0
        %vm1116 = vcmp.gt.f32.partialorder %v1006, 0.0
        %vm1117 = vcmp.gt.f32.partialorder %v1009, 0.0
        %vm1118 = vcmp.gt.f32.partialorder %v1014, 0.0
        %vm1119 = vcmp.gt.f32.partialorder %v1017, 0.0
        %vm1120 = vcmp.gt.f32.partialorder %v1022, 0.0
        %vm1121 = vcmp.gt.f32.partialorder %v1025, 0.0
        %vm1122 = vcmp.gt.f32.partialorder %v1030, 0.0
        %vm1123 = vcmp.gt.f32.partialorder %v1033, 0.0
        %vm1124 = vcmp.gt.f32.partialorder %v1038, 0.0
        %vm1125 = vcmp.gt.f32.partialorder %v1041, 0.0
        %vm1126 = vcmp.gt.f32.partialorder %v1046, 0.0
        %vm1127 = vcmp.gt.f32.partialorder %v1049, 0.0
        %vm1128 = vcmp.gt.f32.partialorder %v1054, 0.0
        %vm1129 = vcmp.gt.f32.partialorder %v1057, 0.0
        %vm1130 = vcmp.gt.f32.partialorder %v1062, 0.0
        %vm1131 = vcmp.gt.f32.partialorder %v1065, 0.0
        %v1132 = vmul.f32 %v814, 0.2
        %v1133 = vmul.f32 %v817, 0.2
        %v1134 = vmul.f32 %v822, 0.2
        %v1135 = vmul.f32 %v825, 0.2
        %v1136 = vmul.f32 %v830, 0.2
        %v1137 = vmul.f32 %v833, 0.2
        %v1138 = vmul.f32 %v838, 0.2
        %v1139 = vmul.f32 %v841, 0.2
        %v1140 = vmul.f32 %v846, 0.2
        %v1141 = vmul.f32 %v849, 0.2
        %v1142 = vmul.f32 %v854, 0.2
        %v1143 = vmul.f32 %v857, 0.2
        %v1144 = vmul.f32 %v862, 0.2
        %v1145 = vmul.f32 %v865, 0.2
        %v1146 = vmul.f32 %v870, 0.2
        %v1147 = vmul.f32 %v873, 0.2
        %v1148 = vmul.f32 %v878, 0.2
        %v1149 = vmul.f32 %v881, 0.2
        %v1150 = vmul.f32 %v886, 0.2
        %v1151 = vmul.f32 %v889, 0.2
        %v1152 = vmul.f32 %v894, 0.2
        %v1153 = vmul.f32 %v897, 0.2
        %v1154 = vmul.f32 %v902, 0.2
        %v1155 = vmul.f32 %v905, 0.2
        %v1156 = vmul.f32 %v910, 0.2
        %v1157 = vmul.f32 %v913, 0.2
        %v1158 = vmul.f32 %v918, 0.2
        %v1159 = vmul.f32 %v921, 0.2
        %v1160 = vmul.f32 %v926, 0.2
        %v1161 = vmul.f32 %v929, 0.2
        %v1162 = vmul.f32 %v934, 0.2
        %v1163 = vmul.f32 %v937, 0.2
        %v1164 = vmul.f32 %v942, 0.2
        %v1165 = vmul.f32 %v945, 0.2
        %v1166 = vmul.f32 %v950, 0.2
        %v1167 = vmul.f32 %v953, 0.2
        %v1168 = vmul.f32 %v958, 0.2
        %v1169 = vmul.f32 %v961, 0.2
        %v1170 = vmul.f32 %v966, 0.2
        %v1171 = vmul.f32 %v969, 0.2
        %v1172 = vmul.f32 %v974, 0.2
        %v1173 = vmul.f32 %v977, 0.2
        %v1174 = vmul.f32 %v982, 0.2
        %v1175 = vmul.f32 %v985, 0.2
        %v1176 = vmul.f32 %v990, 0.2
        %v1177 = vmul.f32 %v993, 0.2
        %v1178 = vmul.f32 %v998, 0.2
        %v1179 = vmul.f32 %v1001, 0.2
        %v1180 = vmul.f32 %v1006, 0.2
        %v1181 = vmul.f32 %v1009, 0.2
        %v1182 = vmul.f32 %v1014, 0.2
        %v1183 = vmul.f32 %v1017, 0.2
        %v1184 = vmul.f32 %v1022, 0.2
        %v1185 = vmul.f32 %v1025, 0.2
        %v1186 = vmul.f32 %v1030, 0.2
        %v1187 = vmul.f32 %v1033, 0.2
        %v1188 = vmul.f32 %v1038, 0.2
        %v1189 = vmul.f32 %v1041, 0.2
        %v1190 = vmul.f32 %v1046, 0.2
        %v1191 = vmul.f32 %v1049, 0.2
        %v1192 = vmul.f32 %v1054, 0.2
        %v1193 = vmul.f32 %v1057, 0.2
        %v1194 = vmul.f32 %v1062, 0.2
        %v1195 = vmul.f32 %v1065, 0.2
        %v1196 = vsel %vm1068, %v814, %v1132
        %v1197 = vsel %vm1069, %v817, %v1133
        %v1198 = vsel %vm1070, %v822, %v1134
        %v1199 = vsel %vm1071, %v825, %v1135
        %v1200 = vsel %vm1072, %v830, %v1136
        %v1201 = vsel %vm1073, %v833, %v1137
        %v1202 = vsel %vm1074, %v838, %v1138
        %v1203 = vsel %vm1075, %v841, %v1139
        %v1204 = vsel %vm1076, %v846, %v1140
        %v1205 = vsel %vm1077, %v849, %v1141
        %v1206 = vsel %vm1078, %v854, %v1142
        %v1207 = vsel %vm1079, %v857, %v1143
        %v1208 = vsel %vm1080, %v862, %v1144
        %v1209 = vsel %vm1081, %v865, %v1145
        %v1210 = vsel %vm1082, %v870, %v1146
        %v1211 = vsel %vm1083, %v873, %v1147
        %v1212 = vsel %vm1084, %v878, %v1148
        %v1213 = vsel %vm1085, %v881, %v1149
        %v1214 = vsel %vm1086, %v886, %v1150
        %v1215 = vsel %vm1087, %v889, %v1151
        %v1216 = vsel %vm1088, %v894, %v1152
        %v1217 = vsel %vm1089, %v897, %v1153
        %v1218 = vsel %vm1090, %v902, %v1154
        %v1219 = vsel %vm1091, %v905, %v1155
        %v1220 = vsel %vm1092, %v910, %v1156
        %v1221 = vsel %vm1093, %v913, %v1157
        %v1222 = vsel %vm1094, %v918, %v1158
        %v1223 = vsel %vm1095, %v921, %v1159
        %v1224 = vsel %vm1096, %v926, %v1160
        %v1225 = vsel %vm1097, %v929, %v1161
        %v1226 = vsel %vm1098, %v934, %v1162
        %v1227 = vsel %vm1099, %v937, %v1163
        %v1228 = vsel %vm1100, %v942, %v1164
        %v1229 = vsel %vm1101, %v945, %v1165
        %v1230 = vsel %vm1102, %v950, %v1166
        %v1231 = vsel %vm1103, %v953, %v1167
        %v1232 = vsel %vm1104, %v958, %v1168
        %v1233 = vsel %vm1105, %v961, %v1169
        %v1234 = vsel %vm1106, %v966, %v1170
        %v1235 = vsel %vm1107, %v969, %v1171
        %v1236 = vsel %vm1108, %v974, %v1172
        %v1237 = vsel %vm1109, %v977, %v1173
        %v1238 = vsel %vm1110, %v982, %v1174
        %v1239 = vsel %vm1111, %v985, %v1175
        %v1240 = vsel %vm1112, %v990, %v1176
        %v1241 = vsel %vm1113, %v993, %v1177
        %v1242 = vsel %vm1114, %v998, %v1178
        %v1243 = vsel %vm1115, %v1001, %v1179
        %v1244 = vsel %vm1116, %v1006, %v1180
        %v1245 = vsel %vm1117, %v1009, %v1181
        %v1246 = vsel %vm1118, %v1014, %v1182
        %v1247 = vsel %vm1119, %v1017, %v1183
        %v1248 = vsel %vm1120, %v1022, %v1184
        %v1249 = vsel %vm1121, %v1025, %v1185
        %v1250 = vsel %vm1122, %v1030, %v1186
        %v1251 = vsel %vm1123, %v1033, %v1187
        %v1252 = vsel %vm1124, %v1038, %v1188
        %v1253 = vsel %vm1125, %v1041, %v1189
        %v1254 = vsel %vm1126, %v1046, %v1190
        %v1255 = vsel %vm1127, %v1049, %v1191
        %v1256 = vsel %vm1128, %v1054, %v1192
        %v1257 = vsel %vm1129, %v1057, %v1193
        %v1258 = vsel %vm1130, %v1062, %v1194
        %v1259 = vsel %vm1131, %v1065, %v1195
        %1260 = vst [vmem:[%s233] sm:$0xff] %v1196
        %1261 = vst [vmem:[%s233 + $0x8] sm:$0xff] %v1197
        %1262 = vst [vmem:[%s233 + $0x10] sm:$0xff] %v1198
        %1263 = vst [vmem:[%s233 + $0x18] sm:$0xff] %v1199
        %1264 = vst [vmem:[%s233 + $0x20] sm:$0xff] %v1200
        %1265 = vst [vmem:[%s233 + $0x28] sm:$0xff] %v1201
        %1266 = vst [vmem:[%s233 + $0x30] sm:$0xff] %v1202
        %1267 = vst [vmem:[%s233 + $0x38] sm:$0xff] %v1203
        %1268 = vst [vmem:[%s233 + $0x40] sm:$0xff] %v1204
        %1269 = vst [vmem:[%s233 + $0x48] sm:$0xff] %v1205
        %1270 = vst [vmem:[%s233 + $0x50] sm:$0xff] %v1206
        %1271 = vst [vmem:[%s233 + $0x58] sm:$0xff] %v1207
        %1272 = vst [vmem:[%s233 + $0x60] sm:$0xff] %v1208
        %1273 = vst [vmem:[%s233 + $0x68] sm:$0xff] %v1209
        %1274 = vst [vmem:[%s233 + $0x70] sm:$0xff] %v1210
        %1275 = vst [vmem:[%s233 + $0x78] sm:$0xff] %v1211
        %1276 = vst [vmem:[%s233 + $0x80] sm:$0xff] %v1212
        %1277 = vst [vmem:[%s233 + $0x88] sm:$0xff] %v1213
        %1278 = vst [vmem:[%s233 + $0x90] sm:$0xff] %v1214
        %1279 = vst [vmem:[%s233 + $0x98] sm:$0xff] %v1215
        %1280 = vst [vmem:[%s233 + $0xa0] sm:$0xff] %v1216
        %1281 = vst [vmem:[%s233 + $0xa8] sm:$0xff] %v1217
        %1282 = vst [vmem:[%s233 + $0xb0] sm:$0xff] %v1218
        %1283 = vst [vmem:[%s233 + $0xb8] sm:$0xff] %v1219
        %1284 = vst [vmem:[%s233 + $0xc0] sm:$0xff] %v1220
        %1285 = vst [vmem:[%s233 + $0xc8] sm:$0xff] %v1221
        %1286 = vst [vmem:[%s233 + $0xd0] sm:$0xff] %v1222
        %1287 = vst [vmem:[%s233 + $0xd8] sm:$0xff] %v1223
        %1288 = vst [vmem:[%s233 + $0xe0] sm:$0xff] %v1224
        %1289 = vst [vmem:[%s233 + $0xe8] sm:$0xff] %v1225
        %1290 = vst [vmem:[%s233 + $0xf0] sm:$0xff] %v1226
        %1291 = vst [vmem:[%s233 + $0xf8] sm:$0xff] %v1227
        %1292 = vst [vmem:[%s233 + $0x100] sm:$0xff] %v1228
        %1293 = vst [vmem:[%s233 + $0x108] sm:$0xff] %v1229
        %1294 = vst [vmem:[%s233 + $0x110] sm:$0xff] %v1230
        %1295 = vst [vmem:[%s233 + $0x118] sm:$0xff] %v1231
        %1296 = vst [vmem:[%s233 + $0x120] sm:$0xff] %v1232
        %1297 = vst [vmem:[%s233 + $0x128] sm:$0xff] %v1233
        %1298 = vst [vmem:[%s233 + $0x130] sm:$0xff] %v1234
        %1299 = vst [vmem:[%s233 + $0x138] sm:$0xff] %v1235
        %1300 = vst [vmem:[%s233 + $0x140] sm:$0xff] %v1236
        %1301 = vst [vmem:[%s233 + $0x148] sm:$0xff] %v1237
        %1302 = vst [vmem:[%s233 + $0x150] sm:$0xff] %v1238
        %1303 = vst [vmem:[%s233 + $0x158] sm:$0xff] %v1239
        %1304 = vst [vmem:[%s233 + $0x160] sm:$0xff] %v1240
        %1305 = vst [vmem:[%s233 + $0x168] sm:$0xff] %v1241
        %1306 = vst [vmem:[%s233 + $0x170] sm:$0xff] %v1242
        %1307 = vst [vmem:[%s233 + $0x178] sm:$0xff] %v1243
        %1308 = vst [vmem:[%s233 + $0x180] sm:$0xff] %v1244
        %1309 = vst [vmem:[%s233 + $0x188] sm:$0xff] %v1245
        %1310 = vst [vmem:[%s233 + $0x190] sm:$0xff] %v1246
        %1311 = vst [vmem:[%s233 + $0x198] sm:$0xff] %v1247
        %1312 = vst [vmem:[%s233 + $0x1a0] sm:$0xff] %v1248
        %1313 = vst [vmem:[%s233 + $0x1a8] sm:$0xff] %v1249
        %1314 = vst [vmem:[%s233 + $0x1b0] sm:$0xff] %v1250
        %1315 = vst [vmem:[%s233 + $0x1b8] sm:$0xff] %v1251
        %1316 = vst [vmem:[%s233 + $0x1c0] sm:$0xff] %v1252
        %1317 = vst [vmem:[%s233 + $0x1c8] sm:$0xff] %v1253
        %1318 = vst [vmem:[%s233 + $0x1d0] sm:$0xff] %v1254
        %1319 = vst [vmem:[%s233 + $0x1d8] sm:$0xff] %v1255
        %1320 = vst [vmem:[%s233 + $0x1e0] sm:$0xff] %v1256
        %1321 = vst [vmem:[%s233 + $0x1e8] sm:$0xff] %v1257
        %1322 = vst [vmem:[%s233 + $0x1f0] sm:$0xff] %v1258
        %1323 = vst [vmem:[%s233 + $0x1f8] sm:$0xff] %v1259
        %s1324 = sand.u32 %s128, 1
        %s1325 = scalar_lea.sflag [#allocation3], %s1324
        %s1326 = sand.u32 %s128, 1
        %s1327 = smul.addr %s1326, 512
        %s1328 = scalar_lea.vmem [#allocation2], %s1327
        // Predicated region
        $region33: #{_lambda_.1} parent=31 // pred_check
          %p1329 = pneg %p138
        $region34: #{_lambda_.1} parent=31 // pred_check_branch
          %1331 = sbr.rel (%p1329) target = $region36
        $region35: #{_lambda_.1} parent=31 // pred_region
          %s1332 = smul.u32 64, %s22
          %s1334 = ssub.s32 8192, 8192
          %1335 = vsyncadd %s1325, %s1334
          %s1336 = sadd.s32 %s23, %s1332
          %s1337 = smul.addr %s1336, 128
          %s1338 = scalar_lea.hbm %s3, %s1337
          %s1339 = sshll.u32 %s1328, 4
          %s1340 = int_to_ptr.vmem [resolvable:$true] %s1339
          %1345 = dma.vmem_to_hbm [thread:$0]  %s1340, 8192, %s1338, %s1325, 128, 128, 8
        $region36: #{_lambda_.1} parent=31 // pred_fallthru
          _
      $region32: #{_lambda_.1} parent=5 // pred_fallthru
        _
      %p1346 = scmp.le.s32.totalorder 2, %s12
      // Predicated region
      $region37: #{_lambda_.1} parent=5 // pred_check
        %p1347 = pneg %p1346
      $region38: #{_lambda_.1} parent=5 // pred_check_branch
        %1349 = sbr.rel (%p1347) target = $region40
      $region39: #{_lambda_.1} parent=5 // pred_region
        %s1350 = ssub.s32 %s12, 2
        // Predicated region
        $region41: #{_lambda_.1} parent=39 // pred_check
          %p1351 = pneg %p144
        $region42: #{_lambda_.1} parent=39 // pred_check_branch
          %1353 = sbr.rel (%p1351) target = $region44
        $region43: #{_lambda_.1} parent=39 // pred_region
          %s1354 = sand.u32 %s129, 1
          %s1355 = scalar_lea.sflag [#allocation3], %s1354
          %s1356 = sand.u32 %s129, 1
          %s1357 = smul.addr %s1356, 512
          %s1358 = scalar_lea.vmem [#allocation2], %s1357
          %1359 = dma.done %s1355, 8192
        $region44: #{_lambda_.1} parent=39 // pred_fallthru
          _
      $region40: #{_lambda_.1} parent=5 // pred_fallthru
        _
    $region6: #{_lambda_.1} parent=1 // loop_footer
      %s16 = sadd.s32 1, %s12
    $region7: #{_lambda_.1} parent=1 // loop_footer_branch
      %11 = sbr.rel target = $region3
    $region8: #{_lambda_.1} parent=1 // loop_exit
      _
    %1360 = vsyncpa [#allocation3], 1
    %s1361 = scalar_lea.sflag [#allocation3], 1
    %1362 = vsyncpa %s1361, 1

</llo_original>
